<compile_context>
chip_gen: v7x
topology: tpu7x:2x2x1
jax: 0.10.0
libtpu: 0.0.40
codegen_flags: <defaults>
</compile_context>

<pallas_src>
import math

import jax
import jax.numpy as jnp
from jax.experimental import pallas as pl
from jax.experimental.pallas import tpu as pltpu


def _round_up(x, m):
    return ((x + m - 1) // m) * m


def _time_mlp_kernel(t_ref, freq_ref, phase_ref, w1_ref, b1_ref, w2_ref, b2_ref, o_ref):
    """One batch tile of mlp(sinusoidal_embed(t)), entirely in VMEM.

    t_ref     : (TB, 1)        f32   time steps (column)
    freq_ref  : (1, din)       f32   [freqs, freqs, 0...]  (zero-padded to lane width)
    phase_ref : (1, din)       f32   [0..., pi/2..., 0...]
    w1_ref    : (din, hidden)  bf16  zero-padded input rows
    b1_ref    : (1, hidden)    f32
    w2_ref    : (hidden, dout) bf16  zero-padded output cols
    b2_ref    : (1, dout)      f32   zero-padded
    o_ref     : (TB, dout)     f32
    """
    t = t_ref[...]                                               # (TB, 1)
    # Fused sinusoidal embedding: sin(t*f) for the first half, sin(t*f + pi/2)
    # = cos(t*f) for the second half. Single mul + add + sin, no concat.
    emb = jnp.sin(t * freq_ref[...] + phase_ref[...])            # (TB, din) f32

    # Linear 1 on the MXU in bf16 with f32 accumulation.
    h = jnp.dot(emb.astype(jnp.bfloat16), w1_ref[...],
                preferred_element_type=jnp.float32) + b1_ref[...]
    # SiLU: h * sigmoid(h) == 0.5 * h * (1 + tanh(h/2))  -- one EUP tanh.
    h = 0.5 * h * (1.0 + jnp.tanh(0.5 * h))
    # Linear 2.
    out = jnp.dot(h.astype(jnp.bfloat16), w2_ref[...],
                  preferred_element_type=jnp.float32) + b2_ref[...]
    o_ref[...] = out.astype(o_ref.dtype)


def make_time_mlp_embedding(w1, b1, w2, b2, *, tb_cap=512):
    """Precompute (once) padded / bf16-cast parameter tensors and return a
    callable t -> (B, dim) matching PyTorch TimeMLPEmbedding.forward.

    w1: (dim, 4*dim)  b1: (4*dim,)  w2: (4*dim, dim)  b2: (dim,)
    """
    dim, hidden = w1.shape
    assert w2.shape == (hidden, dim)
    assert dim >= 4 and dim % 2 == 0, "dim must be even and >= 4 (half_dim - 1 > 0)"
    half_dim = dim // 2

    # ---- Precomputed sinusoidal tables, padded to lane-dense width --------
    din = _round_up(dim, 128)
    dout = _round_up(dim, 128)
    scale = math.log(10000.0) / (half_dim - 1)
    freqs = jnp.exp(jnp.arange(half_dim, dtype=jnp.float32) * -scale)          # (half,)
    freqs_full = jnp.pad(jnp.concatenate([freqs, freqs]),
                         (0, din - dim)).reshape(1, din)                        # (1, din)
    phase = jnp.pad(
        jnp.concatenate([jnp.zeros((half_dim,), jnp.float32),
                         jnp.full((half_dim,), jnp.pi / 2, jnp.float32)]),
        (0, din - dim)).reshape(1, din)                                         # (1, din)

    # ---- Parameter prep (hoisted out of the hot path, done once) ----------
    w1p = jnp.pad(w1.astype(jnp.float32),
                  ((0, din - dim), (0, 0))).astype(jnp.bfloat16)                # (din, hidden)
    b1_2d = b1.astype(jnp.float32).reshape(1, hidden)
    w2p = jnp.pad(w2.astype(jnp.float32),
                  ((0, 0), (0, dout - dim))).astype(jnp.bfloat16)               # (hidden, dout)
    b2p = jnp.pad(b2.astype(jnp.float32), (0, dout - dim)).reshape(1, dout)

    weight_bytes = (freqs_full.nbytes + phase.nbytes + w1p.nbytes
                    + b1_2d.nbytes + w2p.nbytes + b2p.nbytes)

    # Constant blocks: index_map -> (0,0) and single-buffered (no point
    # double-buffering data that never changes).
    fixed = lambda shape: pl.BlockSpec(shape, lambda i: (0, 0),
                                       pipeline_mode=pl.Buffered(1))
    moving = lambda shape: pl.BlockSpec(shape, lambda i: (i, 0))

    def call(t):
        B = t.shape[0]

        # ---- Batch tiling --------------------------------------------------
        TB = min(_round_up(B, 8), tb_cap)
        if B >= 256:
            # Compute-bound regime: make sure there are >= 2 batch tiles so the
            # "parallel" axis can feed both TensorCores on v7x.
            TB = min(_round_up(pl.cdiv(B, 2), 8), tb_cap)
        Bpad = _round_up(B, TB)
        num_blocks = Bpad // TB

        t2d = t.astype(jnp.float32).reshape(B, 1)
        if Bpad != B:
            t2d = jnp.pad(t2d, ((0, Bpad - B), (0, 0)))

        # ---- VMEM budget (single-buffered weights + double-buffered t/out) -
        io_bytes = 2 * (TB * 4 + TB * dout * 4)
        scratch_bytes = 2 * TB * (din + hidden + dout) * 4   # intermediates, generous
        vmem_limit = max(16 << 20, weight_bytes + io_bytes + scratch_bytes + (4 << 20))
        vmem_limit = min(vmem_limit, 64 << 20)               # v7x physical VMEM

        flops = 2 * Bpad * hidden * (din + dout)             # two matmuls
        transcendentals = Bpad * (din + hidden)              # sin + tanh
        bytes_accessed = t2d.nbytes + weight_bytes + Bpad * dout * 4

        out_padded = pl.pallas_call(
            _time_mlp_kernel,
            out_shape=jax.ShapeDtypeStruct((Bpad, dout), jnp.float32),
            grid=(num_blocks,),
            in_specs=[
                moving((TB, 1)),          # t column (tiny masked load; not on crit path)
                fixed((1, din)),          # freqs (VMEM-resident across tiles)
                fixed((1, din)),          # phase
                fixed((din, hidden)),     # w1 (bf16, input-padded)
                fixed((1, hidden)),       # b1
                fixed((hidden, dout)),    # w2 (bf16, output-padded)
                fixed((1, dout)),         # b2
            ],
            out_specs=moving((TB, dout)),
            compiler_params=pltpu.CompilerParams(
                dimension_semantics=("parallel",),
                vmem_limit_bytes=int(vmem_limit)),
            cost_estimate=pl.CostEstimate(
                flops=int(flops),
                transcendentals=int(transcendentals),
                bytes_accessed=int(bytes_accessed)),
        )(t2d, freqs_full, phase, w1p, b1_2d, w2p, b2p)

        if Bpad == B and dout == dim:
            return out_padded                        # elide no-op slice
        return out_padded[:B, :dim]

    return call


def reference(t, w1, b1, w2, b2):
    """Pure-JAX f32 reference matching the PyTorch forward."""
    dim = w1.shape[0]
    half_dim = dim // 2
    scale = math.log(10000.0) / (half_dim - 1)
    freqs = jnp.exp(jnp.arange(half_dim, dtype=jnp.float32) * -scale)
    args = t[:, None] * freqs[None, :]
    emb = jnp.concatenate([jnp.sin(args), jnp.cos(args)], axis=-1)
    h = emb @ w1 + b1
    h = h * jax.nn.sigmoid(h)
    return h @ w2 + b2


if __name__ == "__main__":
    B = 8
    dim = 32
    hidden = dim * 4

    key = jax.random.PRNGKey(0)
    k_t, k_w1, k_b1, k_w2, k_b2 = jax.random.split(key, 5)

    # Deterministic parameter init (PyTorch-style uniform bounds).
    bound1 = 1.0 / math.sqrt(dim)
    bound2 = 1.0 / math.sqrt(hidden)
    t = jax.random.uniform(k_t, (B,), jnp.float32, 0.0, 1000.0)
    w1 = jax.random.uniform(k_w1, (dim, hidden), jnp.float32, -bound1, bound1)
    b1 = jax.random.uniform(k_b1, (hidden,), jnp.float32, -bound1, bound1)
    w2 = jax.random.uniform(k_w2, (hidden, dim), jnp.float32, -bound2, bound2)
    b2 = jax.random.uniform(k_b2, (dim,), jnp.float32, -bound2, bound2)

    time_mlp = make_time_mlp_embedding(w1, b1, w2, b2)
    out = time_mlp(t)
    jax.block_until_ready(out)

    ref = reference(t, w1, b1, w2, b2)
    assert out.shape == (B, dim)
    # Tolerance loosened vs f32-only version: matmul inputs are bf16 (f32 acc).
    assert jnp.allclose(out, ref, atol=5e-2, rtol=5e-2), "mismatch vs reference"

    print("KERNEL_OK")
</pallas_src>

<mosaic_0001>
module attributes {stable_mosaic.version = 11 : i64} {
  func.func @_time_mlp_kernel(%arg0: i32, %arg1: memref<8x1xf32, #tpu.memory_space<vmem>>, %arg2: memref<1x128xf32, #tpu.memory_space<vmem>>, %arg3: memref<1x128xf32, #tpu.memory_space<vmem>>, %arg4: memref<128x128xbf16, #tpu.memory_space<vmem>>, %arg5: memref<1x128xf32, #tpu.memory_space<vmem>>, %arg6: memref<128x128xbf16, #tpu.memory_space<vmem>>, %arg7: memref<1x128xf32, #tpu.memory_space<vmem>>, %arg8: memref<8x128xf32, #tpu.memory_space<vmem>>) attributes {dimension_semantics = [#tpu.dimension_semantics<parallel>], iteration_bounds = array<i64: 1>, scalar_prefetch = 0 : i64, scratch_operands = 0 : i64, tpu.core_type = #tpu.core_type<tc>, window_params = [{transform_indices = @transform_0, window_bounds = array<i64: 8, 1>}, {pipeline_mode = #tpu.pipeline_mode<synchronous>, transform_indices = @transform_1, window_bounds = array<i64: 1, 128>}, {pipeline_mode = #tpu.pipeline_mode<synchronous>, transform_indices = @transform_2, window_bounds = array<i64: 1, 128>}, {pipeline_mode = #tpu.pipeline_mode<synchronous>, transform_indices = @transform_3, window_bounds = array<i64: 128, 128>}, {pipeline_mode = #tpu.pipeline_mode<synchronous>, transform_indices = @transform_4, window_bounds = array<i64: 1, 128>}, {pipeline_mode = #tpu.pipeline_mode<synchronous>, transform_indices = @transform_5, window_bounds = array<i64: 128, 128>}, {pipeline_mode = #tpu.pipeline_mode<synchronous>, transform_indices = @transform_6, window_bounds = array<i64: 1, 128>}, {transform_indices = @transform_7, window_bounds = array<i64: 8, 128>}]} {
    %c0 = arith.constant 0 : index
    %c0_0 = arith.constant 0 : index
    %0 = vector.load %arg1[%c0, %c0_0] : memref<8x1xf32, #tpu.memory_space<vmem>>, vector<8x1xf32>
    %c0_1 = arith.constant 0 : index
    %c0_2 = arith.constant 0 : index
    %1 = vector.load %arg2[%c0_1, %c0_2] : memref<1x128xf32, #tpu.memory_space<vmem>>, vector<1x128xf32>
    %2 = vector.broadcast %0 : vector<8x1xf32> to vector<8x128xf32>
    %3 = vector.broadcast %1 : vector<1x128xf32> to vector<8x128xf32>
    %4 = arith.mulf %2, %3 : vector<8x128xf32>
    %c0_3 = arith.constant 0 : index
    %c0_4 = arith.constant 0 : index
    %5 = vector.load %arg3[%c0_3, %c0_4] : memref<1x128xf32, #tpu.memory_space<vmem>>, vector<1x128xf32>
    %6 = vector.broadcast %5 : vector<1x128xf32> to vector<8x128xf32>
    %7 = arith.addf %4, %6 : vector<8x128xf32>
    %8 = math.sin %7 : vector<8x128xf32>
    %9 = arith.truncf %8 : vector<8x128xf32> to vector<8x128xbf16>
    %c0_5 = arith.constant 0 : index
    %c0_6 = arith.constant 0 : index
    %10 = vector.load %arg4[%c0_5, %c0_6] : memref<128x128xbf16, #tpu.memory_space<vmem>>, vector<128x128xbf16>
    %cst = arith.constant dense<0.000000e+00> : vector<8x128xf32>
    %11 = tpu.matmul %9, %10, %cst {dimension_numbers = #tpu.dot_dimension_numbers<[1], [0], [0], [1], [0, 0, 1, 1], [], []>} : vector<8x128xbf16>, vector<128x128xbf16>, vector<8x128xf32> -> vector<8x128xf32>
    %c0_7 = arith.constant 0 : index
    %c0_8 = arith.constant 0 : index
    %12 = vector.load %arg5[%c0_7, %c0_8] : memref<1x128xf32, #tpu.memory_space<vmem>>, vector<1x128xf32>
    %13 = vector.broadcast %12 : vector<1x128xf32> to vector<8x128xf32>
    %14 = arith.addf %11, %13 : vector<8x128xf32>
    %cst_9 = arith.constant 5.000000e-01 : f32
    %15 = vector.broadcast %cst_9 : f32 to vector<8x128xf32>
    %16 = arith.mulf %15, %14 : vector<8x128xf32>
    %cst_10 = arith.constant 5.000000e-01 : f32
    %17 = vector.broadcast %cst_10 : f32 to vector<8x128xf32>
    %18 = arith.mulf %17, %14 : vector<8x128xf32>
    %19 = math.tanh %18 : vector<8x128xf32>
    %cst_11 = arith.constant 1.000000e+00 : f32
    %20 = vector.broadcast %cst_11 : f32 to vector<8x128xf32>
    %21 = arith.addf %20, %19 : vector<8x128xf32>
    %22 = arith.mulf %16, %21 : vector<8x128xf32>
    %23 = arith.truncf %22 : vector<8x128xf32> to vector<8x128xbf16>
    %c0_12 = arith.constant 0 : index
    %c0_13 = arith.constant 0 : index
    %24 = vector.load %arg6[%c0_12, %c0_13] : memref<128x128xbf16, #tpu.memory_space<vmem>>, vector<128x128xbf16>
    %cst_14 = arith.constant dense<0.000000e+00> : vector<8x128xf32>
    %25 = tpu.matmul %23, %24, %cst_14 {dimension_numbers = #tpu.dot_dimension_numbers<[1], [0], [0], [1], [0, 0, 1, 1], [], []>} : vector<8x128xbf16>, vector<128x128xbf16>, vector<8x128xf32> -> vector<8x128xf32>
    %c0_15 = arith.constant 0 : index
    %c0_16 = arith.constant 0 : index
    %26 = vector.load %arg7[%c0_15, %c0_16] : memref<1x128xf32, #tpu.memory_space<vmem>>, vector<1x128xf32>
    %27 = vector.broadcast %26 : vector<1x128xf32> to vector<8x128xf32>
    %28 = arith.addf %25, %27 : vector<8x128xf32>
    %c0_17 = arith.constant 0 : index
    %c0_18 = arith.constant 0 : index
    %29 = vector.load %arg8[%c0_17, %c0_18] : memref<8x128xf32, #tpu.memory_space<vmem>>, vector<8x128xf32>
    tpu.vector_store %arg8[%c0_17, %c0_18], %28 {strides = array<i32>} : memref<8x128xf32, #tpu.memory_space<vmem>>, vector<8x128xf32>,
    return
  }
  func.func @transform_0(%arg0: i32) -> (i32, i32) {
    %c0_i32 = arith.constant 0 : i32
    %c0_i32_0 = arith.constant 0 : i32
    return %arg0, %c0_i32 : i32, i32
  }
  func.func @transform_1(%arg0: i32) -> (i32, i32) {
    %c0_i32 = arith.constant 0 : i32
    %c0_i32_0 = arith.constant 0 : i32
    %c0_i32_1 = arith.constant 0 : i32
    return %c0_i32, %c0_i32_0 : i32, i32
  }
  func.func @transform_2(%arg0: i32) -> (i32, i32) {
    %c0_i32 = arith.constant 0 : i32
    %c0_i32_0 = arith.constant 0 : i32
    %c0_i32_1 = arith.constant 0 : i32
    return %c0_i32, %c0_i32_0 : i32, i32
  }
  func.func @transform_3(%arg0: i32) -> (i32, i32) {
    %c0_i32 = arith.constant 0 : i32
    %c0_i32_0 = arith.constant 0 : i32
    %c0_i32_1 = arith.constant 0 : i32
    return %c0_i32, %c0_i32_0 : i32, i32
  }
  func.func @transform_4(%arg0: i32) -> (i32, i32) {
    %c0_i32 = arith.constant 0 : i32
    %c0_i32_0 = arith.constant 0 : i32
    %c0_i32_1 = arith.constant 0 : i32
    return %c0_i32, %c0_i32_0 : i32, i32
  }
  func.func @transform_5(%arg0: i32) -> (i32, i32) {
    %c0_i32 = arith.constant 0 : i32
    %c0_i32_0 = arith.constant 0 : i32
    %c0_i32_1 = arith.constant 0 : i32
    return %c0_i32, %c0_i32_0 : i32, i32
  }
  func.func @transform_6(%arg0: i32) -> (i32, i32) {
    %c0_i32 = arith.constant 0 : i32
    %c0_i32_0 = arith.constant 0 : i32
    %c0_i32_1 = arith.constant 0 : i32
    return %c0_i32, %c0_i32_0 : i32, i32
  }
  func.func @transform_7(%arg0: i32) -> (i32, i32) {
    %c0_i32 = arith.constant 0 : i32
    %c0_i32_0 = arith.constant 0 : i32
    return %arg0, %c0_i32 : i32, i32
  }
}

</mosaic_0001>

<llo_original>
// kernel: tpu_custom_call.1
$region0: #{tpu_custom_call.1}
  #allocation0 [shape = 'u32[]', space=smem, size = 0x4, offset = 0x4, fixed_abs, tag = 'smem constant byte address 0x4 - core index']
  #allocation1 [shape = 'u32[144,128]{1,0:T(1,128)}', space=vmem, size = 0x12000, scoped, tag = 'internal scratch']
  %s0 = inlined_call_operand.vmem [shape: f32[8,1], index: 0, kind: input, shape index: {}]
  %s1 = inlined_call_operand.vmem [shape: f32[1,128], index: 1, kind: input, shape index: {}]
  %s2 = inlined_call_operand.vmem [shape: f32[1,128], index: 2, kind: input, shape index: {}]
  %s3 = inlined_call_operand.hbm [shape: bf16[128,128], index: 3, kind: input, shape index: {}]
  %s4 = inlined_call_operand.vmem [shape: f32[1,128], index: 4, kind: input, shape index: {}]
  %s5 = inlined_call_operand.hbm [shape: bf16[128,128], index: 5, kind: input, shape index: {}]
  %s6 = inlined_call_operand.vmem [shape: f32[1,128], index: 6, kind: input, shape index: {}]
  %s7 = inlined_call_operand.hbm [shape: f32[8,128], index: 7, kind: output, shape index: {}]
  %s8 = sld [smem:[#allocation0]]
  $region46: #{tpu_custom_call.1} parent=0
    _
  %s10 = ssub.s32 1, %s8
  %s11 = scalar_select 0, %s10, %s8
  $region1: #{tpu_custom_call.1} parent=0
    #allocation2 [shape = 'u8[32768]{0}', space=vmem, size = 0x8000, scoped, tag = 'input window, operand 3, single buffered']
    #allocation3 [shape = 's32[1]{0}', space=sflag, size = 0x4, scoped, tag = 'scoped memory for tpu_custom_call.1']
    #allocation4 [shape = 's32[1]{0}', space=sflag, size = 0x4, scoped, tag = 'scoped memory for tpu_custom_call.1']
    #allocation5 [shape = 'u8[32768]{0}', space=vmem, size = 0x8000, scoped, tag = 'input window, operand 5, single buffered']
    #allocation6 [shape = 's32[1]{0}', space=sflag, size = 0x4, scoped, tag = 'scoped memory for tpu_custom_call.1']
    #allocation7 [shape = 'u8[4096]{0}', space=vmem, size = 0x1000, scoped, tag = 'output window, operand 0, single buffered']
    %12 = vsyncpa [#allocation3], 0
    %13 = vsyncpa [#allocation6], 0
    %14 = vsyncpa [#allocation4], 0
    // Predicated region
    $region2: #{tpu_custom_call.1} parent=1 // pred_check
      _
    $region3: #{tpu_custom_call.1} parent=1 // pred_check_branch
      %16 = sbr.rel (0) target = $region5
    $region4: #{tpu_custom_call.1} parent=1 // pred_region
      _
    $region5: #{tpu_custom_call.1} parent=1 // pred_fallthru
      _
    // Predicated region
    $region6: #{tpu_custom_call.1} parent=1 // pred_check
      _
    $region7: #{tpu_custom_call.1} parent=1 // pred_check_branch
      %18 = sbr.rel (0) target = $region9
    $region8: #{tpu_custom_call.1} parent=1 // pred_region
      _
    $region9: #{tpu_custom_call.1} parent=1 // pred_fallthru
      _
    // Predicated region
    $region10: #{tpu_custom_call.1} parent=1 // pred_check
      _
    $region11: #{tpu_custom_call.1} parent=1 // pred_check_branch
      %20 = sbr.rel (0) target = $region13
    $region12: #{tpu_custom_call.1} parent=1 // pred_region
      _
    $region13: #{tpu_custom_call.1} parent=1 // pred_fallthru
      _
    // Predicated region
    $region14: #{tpu_custom_call.1} parent=1 // pred_check
      _
    $region15: #{tpu_custom_call.1} parent=1 // pred_check_branch
      %22 = sbr.rel (0) target = $region17
    $region16: #{tpu_custom_call.1} parent=1 // pred_region
      %s24 = ssub.s32 1024, 1024
      %25 = vsyncadd [#allocation3], %s24
      %s26 = sshll.u32 [#allocation2], 4
      %s27 = int_to_ptr.vmem [resolvable:$true] %s26
      %32 = dma.hbm_to_vmem [thread:$0]  %s3, 1024, %s27, [#allocation3], 64, 64, 4
    $region17: #{tpu_custom_call.1} parent=1 // pred_fallthru
      _
    // Predicated region
    $region18: #{tpu_custom_call.1} parent=1 // pred_check
      _
    $region19: #{tpu_custom_call.1} parent=1 // pred_check_branch
      %34 = sbr.rel (0) target = $region21
    $region20: #{tpu_custom_call.1} parent=1 // pred_region
      _
    $region21: #{tpu_custom_call.1} parent=1 // pred_fallthru
      _
    // Predicated region
    $region22: #{tpu_custom_call.1} parent=1 // pred_check
      _
    $region23: #{tpu_custom_call.1} parent=1 // pred_check_branch
      %36 = sbr.rel (0) target = $region25
    $region24: #{tpu_custom_call.1} parent=1 // pred_region
      %s38 = ssub.s32 1024, 1024
      %39 = vsyncadd [#allocation6], %s38
      %s40 = sshll.u32 [#allocation5], 4
      %s41 = int_to_ptr.vmem [resolvable:$true] %s40
      %46 = dma.hbm_to_vmem [thread:$0]  %s5, 1024, %s41, [#allocation6], 64, 64, 4
    $region25: #{tpu_custom_call.1} parent=1 // pred_fallthru
      _
    // Predicated region
    $region26: #{tpu_custom_call.1} parent=1 // pred_check
      _
    $region27: #{tpu_custom_call.1} parent=1 // pred_check_branch
      %48 = sbr.rel (0) target = $region29
    $region28: #{tpu_custom_call.1} parent=1 // pred_region
      _
    $region29: #{tpu_custom_call.1} parent=1 // pred_fallthru
      _
    // Predicated region
    $region30: #{tpu_custom_call.1} parent=1 // pred_check
      _
    $region31: #{tpu_custom_call.1} parent=1 // pred_check_branch
      %50 = sbr.rel (0) target = $region33
    $region32: #{tpu_custom_call.1} parent=1 // pred_region
      %51 = dma.done [#allocation3], 1024
    $region33: #{tpu_custom_call.1} parent=1 // pred_fallthru
      _
    // Predicated region
    $region34: #{tpu_custom_call.1} parent=1 // pred_check
      _
    $region35: #{tpu_custom_call.1} parent=1 // pred_check_branch
      %53 = sbr.rel (0) target = $region37
    $region36: #{tpu_custom_call.1} parent=1 // pred_region
      %54 = dma.done [#allocation6], 1024
    $region37: #{tpu_custom_call.1} parent=1 // pred_fallthru
      _
    %v56 = vld [vmem:[%s0] sm:$0xff]
    %v57 = vld [vmem:[%s1] sm:$0x1]
    %59 = vset.pattern.permute.xlu0 0
    %60 = vperm.xlu0 %59, %v56
    %v61 = vpop.permute.xlu0 %60
    %v64 = vlaneseq
    %v65 = vshrl.u32 %v64, 7
    %v66 = vsub.s32 0, %v65
    %v67 = vrot.slane %v57, %v66
    %v69 = vmul.f32 %v61, %v67
    %v70 = vld [vmem:[%s2] sm:$0x1]
    %v72 = vlaneseq
    %v73 = vshrl.u32 %v72, 7
    %v74 = vsub.s32 0, %v73
    %v75 = vrot.slane %v70, %v74
    %v77 = vadd.f32 %v69, %v75
    %v78 = vand.u32 2147483647, %v77
    %vm79 = vcmp.le.f32.partialorder %v78, 0.7853982
    %vm80 = vcmp.lt.s32.totalorder %v77, 0
    %v81 = vand.u32 %v77, 2139095040
    %v82 = vshrl.u32 %v81, 23
    %v83 = vsub.s32 %v82, 127
    %v84 = vand.u32 2147483647, %v77
    %v85 = vand.u32 %v84, 8388607
    %v86 = vor.u32 %v85, 8388608
    %v87 = vsub.s32 0, %v86
    %v88 = vadd.s32 %v83, 1
    %vm89 = vcmp.gt.s32.totalorder %v88, 0
    %v90 = vsel %vm89, %v88, 0
    %v91 = vshrl.u32 %v90, 5
    %v92 = vand.u32 %v90, 31
    %v93 = vsub.s32 32, %v92
    %v94 = vshrl.u32 683565275, %v93
    %v95 = vshll.u32 683565275, %v92
    %v96 = vshrl.u32 2475754826, %v93
    %v97 = vor.u32 %v95, %v96
    %v98 = vshll.u32 2475754826, %v92
    %v99 = vshrl.u32 2131351028, %v93
    %v100 = vor.u32 %v98, %v99
    %v101 = vshll.u32 2131351028, %v92
    %v102 = vshrl.u32 2102212464, %v93
    %v103 = vor.u32 %v101, %v102
    %v104 = vshll.u32 2102212464, %v92
    %v105 = vshrl.u32 920167782, %v93
    %v106 = vor.u32 %v104, %v105
    %v107 = vshll.u32 920167782, %v92
    %v108 = vshrl.u32 1326507024, %v93
    %v109 = vor.u32 %v107, %v108
    %vm110 = vcmp.lt.s32.totalorder %v91, 1
    %vm111 = vcmp.lt.s32.totalorder %v91, 2
    %vm112 = vcmp.lt.s32.totalorder %v91, 3
    %vm113 = vcmp.lt.s32.totalorder %v91, 4
    %v114 = vsel %vm110, %v94, %v97
    %v115 = vsel %vm113, %v103, 2102212464
    %v116 = vsel %vm112, %v100, %v115
    %v117 = vsel %vm111, %v114, %v116
    %v118 = vsel %vm110, %v97, %v100
    %v119 = vsel %vm113, %v106, 920167782
    %v120 = vsel %vm112, %v103, %v119
    %v121 = vsel %vm111, %v118, %v120
    %v122 = vsel %vm110, %v100, %v103
    %v123 = vsel %vm113, %v109, 1326507024
    %v124 = vsel %vm112, %v106, %v123
    %v125 = vsel %vm111, %v122, %v124
    %v126 = vshll.u32 %v86, 8
    %v127 = vmul.u32.u64.compose %v126, %v125
    %v128 = vextract.low.u32 %v127
    %v129 = vextract.high.u32 %v127
    %v130 = vmul.u32.u64.compose %v126, %v121
    %v131 = vextract.low.u32 %v130
    %v132 = vextract.high.u32 %v130
    %v133 = vmul.u32 %v126, %v117
    %v134 = vadd.s32 %v129, %v131
    %vm135 = vc.u32 %v129, %v131
    %v136 = vadd.s32 %v132, 1
    %v137 = vsel %vm135, %v136, %v132
    %v138 = vadd.s32 %v133, %v137
    %v139 = vadd.s32 %v138, 536870912
    %v140 = vshrl.u32 %v139, 30
    %v141 = vshll.u32 %v140, 30
    %v142 = vsub.s32 %v138, %v141
    %vm143 = vcmp.lt.s32.totalorder %v142, 0
    %v144 = vsub.s32 0, %v142
    %v145 = vsel %vm143, %v144, %v142
    %v146 = vclz %v145
    %v147 = vsub.s32 %v146, 2
    %vm148 = vcmp.gt.s32.totalorder 0, %v147
    %v149 = vsel %vm148, 0, %v147
    %v150 = vsub.s32 32, %v149
    %v151 = vshll.u32 %v142, %v149
    %v152 = vshrl.u32 %v134, %v150
    %v153 = vor.u32 %v151, %v152
    %v154 = vsub.s32 4294967266, %v149
    %v155 = vadd.s32 %v154, 127
    %v156 = vshll.u32 %v155, 23
    %v157 = vor.u32 4788187, %v156
    %v158 = vand.u32 2147483647, %v157
    %v160 = vcvt.s32.f32 %v153
    %v161 = vmul.f32 %v160, %v158
    %v162 = vxor.u32 %v161, 2147483648
    %v163 = vsel %vm80, %v162, %v161
    %v164 = vsub.s32 4, %v140
    %v165 = vsel %vm80, %v164, %v140
    %v166 = vsel %vm79, %v77, %v163
    %v167 = vsel %vm79, 0, %v165
    %v168 = vcosq.f32.pop %v166
    %v169 = vsinq.f32.pop %v166
    %vm170 = vweird.f32 %v77
    %v171 = vadd.s32 %v167, 3
    %v172 = vand.u32 %v171, 3
    %vm173 = vcmp.lt.s32.totalorder %v172, 2
    %vm174 = vcmp.eq.s32.totalorder %v172, 0
    %v175 = vxor.u32 %v169, 2147483648
    %v176 = vsel %vm174, %v168, %v175
    %vm177 = vcmp.eq.s32.totalorder %v172, 2
    %v178 = vxor.u32 %v168, 2147483648
    %v179 = vsel %vm177, %v178, %v169
    %v180 = vsel %vm173, %v176, %v179
    %v181 = vsel %vm170, nan, %v180
    %v182 = vpack.c.bf16 %v181, %v181
    %v183 = vld [vmem:[#allocation2] sm:$0xf]
    %v184 = vld [vmem:[#allocation2 + $0x4] sm:$0xf]
    %v185 = vld [vmem:[#allocation2 + $0x8] sm:$0xf]
    %v186 = vld [vmem:[#allocation2 + $0xc] sm:$0xf]
    %v187 = vld [vmem:[#allocation2 + $0x10] sm:$0xf]
    %v188 = vld [vmem:[#allocation2 + $0x14] sm:$0xf]
    %v189 = vld [vmem:[#allocation2 + $0x18] sm:$0xf]
    %v190 = vld [vmem:[#allocation2 + $0x1c] sm:$0xf]
    %v191 = vld [vmem:[#allocation2 + $0x20] sm:$0xf]
    %v192 = vld [vmem:[#allocation2 + $0x24] sm:$0xf]
    %v193 = vld [vmem:[#allocation2 + $0x28] sm:$0xf]
    %v194 = vld [vmem:[#allocation2 + $0x2c] sm:$0xf]
    %v195 = vld [vmem:[#allocation2 + $0x30] sm:$0xf]
    %v196 = vld [vmem:[#allocation2 + $0x34] sm:$0xf]
    %v197 = vld [vmem:[#allocation2 + $0x38] sm:$0xf]
    %v198 = vld [vmem:[#allocation2 + $0x3c] sm:$0xf]
    %v199 = vld [vmem:[%s4] sm:$0x1]
    %v201 = vlaneseq
    %v202 = vshrl.u32 %v201, 7
    %v203 = vsub.s32 0, %v202
    %v204 = vrot.slane %v199, %v203
    %v222 = vunpack.c.l.b16 %v183
    %v223 = vunpack.c.l.b16 %v184
    %v224 = vunpack.c.l.b16 %v185
    %v225 = vunpack.c.l.b16 %v186
    %v226 = vunpack.c.l.b16 %v187
    %v227 = vunpack.c.l.b16 %v188
    %v228 = vunpack.c.l.b16 %v189
    %v229 = vunpack.c.l.b16 %v190
    %v230 = vunpack.c.l.b16 %v191
    %v231 = vunpack.c.l.b16 %v192
    %v232 = vunpack.c.l.b16 %v193
    %v233 = vunpack.c.l.b16 %v194
    %v234 = vunpack.c.l.b16 %v195
    %v235 = vunpack.c.l.b16 %v196
    %v236 = vunpack.c.l.b16 %v197
    %v237 = vunpack.c.l.b16 %v198
    %v238 = vpack.c.b16 %v223, %v222
    %v239 = vpack.c.b16 %v225, %v224
    %v240 = vpack.c.b16 %v227, %v226
    %v241 = vpack.c.b16 %v229, %v228
    %v242 = vpack.c.b16 %v231, %v230
    %v243 = vpack.c.b16 %v233, %v232
    %v244 = vpack.c.b16 %v235, %v234
    %v245 = vpack.c.b16 %v237, %v236
    %254 = vmatprep.subr.bf16.mxu0 0
    %255 = vmatpush1.bf16.msra.mxu0 %v238
    %256 = vmatprep.subr.bf16.mxu0 0
    %257 = vmatpush1.bf16.msra.mxu0 %v239
    %258 = vmatprep.subr.bf16.mxu0 0
    %259 = vmatpush1.bf16.msra.mxu0 %v240
    %260 = vmatprep.subr.bf16.mxu0 0
    %261 = vmatpush1.bf16.msra.mxu0 %v241
    %262 = vmatprep.subr.bf16.mxu0 0
    %263 = vmatpush1.bf16.msra.mxu0 %v242
    %264 = vmatprep.subr.bf16.mxu0 0
    %265 = vmatpush1.bf16.msra.mxu0 %v243
    %266 = vmatprep.subr.bf16.mxu0 0
    %267 = vmatpush1.bf16.msra.mxu0 %v244
    %268 = vmatprep.subr.bf16.mxu0 0
    %269 = vmatpush1.bf16.msra.mxu0 %v245
    %270 = vmatprep.subr.bf16.mxu0 0
    %271 = vmatpush1.bf16.msra.mxu0 0
    %272 = vmatprep.subr.bf16.mxu0 0
    %273 = vmatpush1.bf16.msra.mxu0 0
    %274 = vmatprep.subr.bf16.mxu0 0
    %275 = vmatpush1.bf16.msra.mxu0 0
    %276 = vmatprep.subr.bf16.mxu0 0
    %277 = vmatpush1.bf16.msra.mxu0 0
    %278 = vmatprep.subr.bf16.mxu0 0
    %279 = vmatpush1.bf16.msra.mxu0 0
    %280 = vmatprep.subr.bf16.mxu0 0
    %281 = vmatpush1.bf16.msra.mxu0 0
    %282 = vmatprep.subr.bf16.mxu0 0
    %283 = vmatpush1.bf16.msra.mxu0 0
    %284 = vmatprep.subr.bf16.mxu0 0
    %285 = vmatpush1.bf16.msra.mxu0 0
    %286 = vmatprep.mubr.bf16.mxu0 0
    %287 = vmatmul.mubr.bf16.gmra.mrb[0].mxu0 %v182
    %v288 = vpop.f32.mrb[0].mxu0
    %v289 = vadd.f32 %v204, %v288
    %v290 = vpop.f32.mrb[0].mxu0
    %v291 = vpop.f32.mrb[0].mxu0
    %v292 = vpop.f32.mrb[0].mxu0
    %293 = vdwg.mxu0
    %v294 = vmul.f32 %v289, 0.5
    %v295 = vtanh.pop %v294
    %v296 = vadd.f32 %v295, 1.0
    %v297 = vmul.f32 %v294, %v296
    %v298 = vpack.c.bf16 %v297, %v297
    %v299 = vld [vmem:[#allocation5] sm:$0xf]
    %v300 = vld [vmem:[#allocation5 + $0x4] sm:$0xf]
    %v301 = vld [vmem:[#allocation5 + $0x8] sm:$0xf]
    %v302 = vld [vmem:[#allocation5 + $0xc] sm:$0xf]
    %v303 = vld [vmem:[#allocation5 + $0x10] sm:$0xf]
    %v304 = vld [vmem:[#allocation5 + $0x14] sm:$0xf]
    %v305 = vld [vmem:[#allocation5 + $0x18] sm:$0xf]
    %v306 = vld [vmem:[#allocation5 + $0x1c] sm:$0xf]
    %v307 = vld [vmem:[#allocation5 + $0x20] sm:$0xf]
    %v308 = vld [vmem:[#allocation5 + $0x24] sm:$0xf]
    %v309 = vld [vmem:[#allocation5 + $0x28] sm:$0xf]
    %v310 = vld [vmem:[#allocation5 + $0x2c] sm:$0xf]
    %v311 = vld [vmem:[#allocation5 + $0x30] sm:$0xf]
    %v312 = vld [vmem:[#allocation5 + $0x34] sm:$0xf]
    %v313 = vld [vmem:[#allocation5 + $0x38] sm:$0xf]
    %v314 = vld [vmem:[#allocation5 + $0x3c] sm:$0xf]
    %v315 = vld [vmem:[%s6] sm:$0x1]
    %v317 = vlaneseq
    %v318 = vshrl.u32 %v317, 7
    %v319 = vsub.s32 0, %v318
    %v320 = vrot.slane %v315, %v319
    %v338 = vunpack.c.l.b16 %v299
    %v339 = vunpack.c.l.b16 %v300
    %v340 = vunpack.c.l.b16 %v301
    %v341 = vunpack.c.l.b16 %v302
    %v342 = vunpack.c.l.b16 %v303
    %v343 = vunpack.c.l.b16 %v304
    %v344 = vunpack.c.l.b16 %v305
    %v345 = vunpack.c.l.b16 %v306
    %v346 = vunpack.c.l.b16 %v307
    %v347 = vunpack.c.l.b16 %v308
    %v348 = vunpack.c.l.b16 %v309
    %v349 = vunpack.c.l.b16 %v310
    %v350 = vunpack.c.l.b16 %v311
    %v351 = vunpack.c.l.b16 %v312
    %v352 = vunpack.c.l.b16 %v313
    %v353 = vunpack.c.l.b16 %v314
    %v354 = vpack.c.b16 %v339, %v338
    %v355 = vpack.c.b16 %v341, %v340
    %v356 = vpack.c.b16 %v343, %v342
    %v357 = vpack.c.b16 %v345, %v344
    %v358 = vpack.c.b16 %v347, %v346
    %v359 = vpack.c.b16 %v349, %v348
    %v360 = vpack.c.b16 %v351, %v350
    %v361 = vpack.c.b16 %v353, %v352
    %370 = vmatprep.subr.bf16.mxu0 0
    %371 = vmatpush1.bf16.msra.mxu0 %v354
    %372 = vmatprep.subr.bf16.mxu0 0
    %373 = vmatpush1.bf16.msra.mxu0 %v355
    %374 = vmatprep.subr.bf16.mxu0 0
    %375 = vmatpush1.bf16.msra.mxu0 %v356
    %376 = vmatprep.subr.bf16.mxu0 0
    %377 = vmatpush1.bf16.msra.mxu0 %v357
    %378 = vmatprep.subr.bf16.mxu0 0
    %379 = vmatpush1.bf16.msra.mxu0 %v358
    %380 = vmatprep.subr.bf16.mxu0 0
    %381 = vmatpush1.bf16.msra.mxu0 %v359
    %382 = vmatprep.subr.bf16.mxu0 0
    %383 = vmatpush1.bf16.msra.mxu0 %v360
    %384 = vmatprep.subr.bf16.mxu0 0
    %385 = vmatpush1.bf16.msra.mxu0 %v361
    %386 = vmatprep.subr.bf16.mxu0 0
    %387 = vmatpush1.bf16.msra.mxu0 0
    %388 = vmatprep.subr.bf16.mxu0 0
    %389 = vmatpush1.bf16.msra.mxu0 0
    %390 = vmatprep.subr.bf16.mxu0 0
    %391 = vmatpush1.bf16.msra.mxu0 0
    %392 = vmatprep.subr.bf16.mxu0 0
    %393 = vmatpush1.bf16.msra.mxu0 0
    %394 = vmatprep.subr.bf16.mxu0 0
    %395 = vmatpush1.bf16.msra.mxu0 0
    %396 = vmatprep.subr.bf16.mxu0 0
    %397 = vmatpush1.bf16.msra.mxu0 0
    %398 = vmatprep.subr.bf16.mxu0 0
    %399 = vmatpush1.bf16.msra.mxu0 0
    %400 = vmatprep.subr.bf16.mxu0 0
    %401 = vmatpush1.bf16.msra.mxu0 0
    %402 = vmatprep.mubr.bf16.mxu0 0
    %403 = vmatmul.mubr.bf16.gmra.mrb[0].mxu0 %v298
    %v404 = vpop.f32.mrb[0].mxu0
    %v405 = vadd.f32 %v320, %v404
    %v406 = vpop.f32.mrb[0].mxu0
    %v407 = vpop.f32.mrb[0].mxu0
    %v408 = vpop.f32.mrb[0].mxu0
    %409 = vdwg.mxu0
    %410 = vst [vmem:[#allocation7] sm:$0xff] %v405
    // Predicated region
    $region38: #{tpu_custom_call.1} parent=1 // pred_check
      _
    $region39: #{tpu_custom_call.1} parent=1 // pred_check_branch
      %412 = sbr.rel (0) target = $region41
    $region40: #{tpu_custom_call.1} parent=1 // pred_region
      %s414 = ssub.s32 128, 128
      %415 = vsyncadd [#allocation4], %s414
      %s417 = sshll.u32 [#allocation7], 4
      %s418 = int_to_ptr.vmem [resolvable:$true] %s417
      %420 = dma.vmem_to_hbm [thread:$0]  %s418, 128, %s7, [#allocation4]
    $region41: #{tpu_custom_call.1} parent=1 // pred_fallthru
      _
    // Predicated region
    $region42: #{tpu_custom_call.1} parent=1 // pred_check
      _
    $region43: #{tpu_custom_call.1} parent=1 // pred_check_branch
      %422 = sbr.rel (0) target = $region45
    $region44: #{tpu_custom_call.1} parent=1 // pred_region
      %423 = dma.done [#allocation4], 128
    $region45: #{tpu_custom_call.1} parent=1 // pred_fallthru
      _
    %424 = vsyncpa [#allocation3], 1
    %425 = vsyncpa [#allocation6], 1
    %426 = vsyncpa [#allocation4], 1

</llo_original>
